<compile_context>
chip_gen: v6e
topology: v6e:2x2x1
jax: 0.10.0
libtpu: 0.0.40
codegen_flags: <defaults>
</compile_context>

<pallas_src>
import jax
import jax.numpy as jnp
from jax.experimental import pallas as pl
from jax.experimental.pallas import tpu as pltpu


def _sing_point_attention_kernel(center_ref, x_ref, o_ref):
    # center_ref: (1, C, 1[, 1]);  x_ref / o_ref: (1, C, *spatial_tile)
    xf = x_ref[...].astype(jnp.float32)
    # Fold the 0.5 of the tanh-sigmoid into the tiny (1, C, 1[,1]) center tile:
    # removes one full-size VPU multiply per element.
    ctr_half = center_ref[...].astype(jnp.float32) * 0.5
    s = jnp.sum(xf, axis=1, keepdims=True)            # per-pixel channel sum (f32)
    # sigmoid(z) = 0.5 * tanh(z / 2) + 0.5  -> one EUP push per element.
    sim = jnp.tanh(ctr_half * s) * 0.5 + 0.5
    o_ref[...] = (sim * xf).astype(o_ref.dtype)


def _round_up(a, m):
    return ((a + m - 1) // m) * m


def _cdiv(a, b):
    return -(-a // b)


def sing_point_attention(x, *, max_block_bytes=4 * 1024 * 1024):
    """x: (bs, c, h, w) array (NCHW). Returns same shape/dtype."""
    bs, c, h, w = x.shape
    hw = h * w
    itemsize = jnp.dtype(x.dtype).itemsize
    # Sublane packing for this dtype: f32 -> 8 rows/vreg, bf16 -> 16, int8/fp8 -> 32.
    sub = 8 * max(1, 4 // itemsize)

    # Center pixel vector, hoisted out of the kernel (tiny slice; lets each grid
    # step stream only a spatial tile of x instead of the whole image).
    center = x[:, :, h // 2, w // 2]                  # (bs, c)

    n_sub = hw // 128
    # Use the spatial-on-sublanes layout when the channel axis would otherwise be
    # sublane-padded AND the spatial axis is big/aligned enough to be fully dense.
    use_spatial_sublanes = (c % sub != 0) and (hw % 128 == 0) and (n_sub >= sub)

    if use_spatial_sublanes:
        # ---- Layout B: (bs, c, n_sub, 128); spatial owns (sublane, lane) ------
        x_in = x.reshape(bs, c, n_sub, 128)
        center_in = center.reshape(bs, c, 1, 1)

        row_chunk_bytes = c * 128 * itemsize          # bytes per sublane-row of a block
        max_rows = max(sub, (max_block_bytes // row_chunk_bytes) // sub * sub)
        if n_sub <= max_rows:
            t_sub, num_tiles = n_sub, 1               # full spatial extent (always legal)
        else:
            t_sub = max_rows                          # multiple of `sub`; boundary masked
            num_tiles = _cdiv(n_sub, t_sub)
        # Expose >= 4 grid steps when possible (v7x: 2 TensorCores; also pipelining).
        while bs * num_tiles < 4 and t_sub > sub:
            t_new = max(sub, ((t_sub // 2) // sub) * sub)
            n_new = _cdiv(n_sub, t_new)
            if n_new == num_tiles:
                break
            t_sub, num_tiles = t_new, n_new

        block_bytes = c * _round_up(t_sub, sub) * 128 * itemsize
        x_spec = pl.BlockSpec((1, c, t_sub, 128), lambda b, t: (b, 0, t, 0))
        o_spec = pl.BlockSpec((1, c, t_sub, 128), lambda b, t: (b, 0, t, 0))
        ctr_spec = pl.BlockSpec((1, c, 1, 1), lambda b, t: (b, 0, 0, 0))
        out_struct = jax.ShapeDtypeStruct((bs, c, n_sub, 128), x.dtype)
    else:
        # ---- Layout A: (bs, c, hw); hw on lanes, c on sublanes; no pad/slice ---
        x_in = x.reshape(bs, c, hw)
        center_in = center.reshape(bs, c, 1)

        c_pad = _round_up(c, sub)                     # sublane padding of the channel axis
        max_thw = max(128, (max_block_bytes // (c_pad * itemsize)) // 128 * 128)
        if hw <= max_thw:
            thw, num_tiles = hw, 1                    # full spatial extent (legal for any hw)
        else:
            thw = max_thw                             # multiple of 128; boundary block masked
            num_tiles = _cdiv(hw, thw)
        while bs * num_tiles < 4 and thw > 128:
            t_new = max(128, ((thw // 2) // 128) * 128)
            n_new = _cdiv(hw, t_new)
            if n_new == num_tiles:
                break
            thw, num_tiles = t_new, n_new

        block_bytes = c_pad * _round_up(thw, 128) * itemsize
        x_spec = pl.BlockSpec((1, c, thw), lambda b, t: (b, 0, t))
        o_spec = pl.BlockSpec((1, c, thw), lambda b, t: (b, 0, t))
        ctr_spec = pl.BlockSpec((1, c, 1), lambda b, t: (b, 0, 0))
        out_struct = jax.ShapeDtypeStruct((bs, c, hw), x.dtype)

    cost = pl.CostEstimate(
        flops=6 * bs * c * hw,
        transcendentals=bs * c * hw,
        bytes_accessed=2 * bs * c * hw * itemsize + bs * c * itemsize,
    )

    # 2 streamed arrays x 2 pipeline buffers + f32 intermediates headroom.
    # 32 MiB is a safe explicit raise over v5e's 16 MiB default; cap at 48 MiB so
    # we never exceed v7x's 64 MiB physical VMEM per TensorCore.
    vmem_limit = max(32 << 20, min(6 * block_bytes, 48 << 20))

    out = pl.pallas_call(
        _sing_point_attention_kernel,
        out_shape=out_struct,
        grid_spec=pl.GridSpec(
            # bs outer, spatial tiles inner: the center's index_map is constant in
            # t, so it is not re-DMA'd across the inner axis.
            grid=(bs, num_tiles),
            in_specs=[ctr_spec, x_spec],
            out_specs=o_spec,
        ),
        compiler_params=pltpu.CompilerParams(
            dimension_semantics=("parallel", "parallel"),
            vmem_limit_bytes=vmem_limit,
        ),
        cost_estimate=cost,
    )(center_in, x_in)

    return out.reshape(bs, c, h, w)


def _reference(x):
    bs, c, h, w = x.shape
    center = x[:, :, h // 2:h // 2 + 1, w // 2:w // 2 + 1]
    s = jnp.sum(x, axis=1, keepdims=True)
    return jax.nn.sigmoid(center * s) * x


if __name__ == "__main__":
    key = jax.random.PRNGKey(0)
    # Cover all code paths: lane-layout with exact tiles, ragged spatial (14x14),
    # spatial-on-sublanes layout (exact and ragged row counts).
    cases = [
        (2, 4, 16, 16),   # layout A, exact 128-lane tiles
        (2, 3, 14, 14),   # layout A, ragged boundary lanes (MobileNetV3 14x14 map)
        (1, 5, 32, 64),   # layout B (spatial on sublanes), exact row tiles
        (1, 4, 32, 48),   # layout B, ragged boundary rows
    ]
    keys = jax.random.split(key, len(cases))
    for k, shape in zip(keys, cases):
        x = jax.random.normal(k, shape, dtype=jnp.float32)
        out = jax.block_until_ready(sing_point_attention(x))
        ref = _reference(x)
        assert out.shape == shape
        assert jnp.allclose(out, ref, atol=1e-5, rtol=1e-5), f"mismatch for {shape}"

    print("KERNEL_OK")
</pallas_src>

<mosaic_0001>
module attributes {stable_mosaic.version = 11 : i64} {
  func.func @_sing_point_attention_kernel(%arg0: i32, %arg1: i32, %arg2: memref<1x4x1xf32, #tpu.memory_space<vmem>>, %arg3: memref<1x4x128xf32, #tpu.memory_space<vmem>>, %arg4: memref<1x4x128xf32, #tpu.memory_space<vmem>>) attributes {dimension_semantics = [#tpu.dimension_semantics<parallel>, #tpu.dimension_semantics<parallel>], iteration_bounds = array<i64: 2, 2>, scalar_prefetch = 0 : i64, scratch_operands = 0 : i64, tpu.core_type = #tpu.core_type<tc>, window_params = [{transform_indices = @transform_0, window_bounds = array<i64: 1, 4, 1>}, {transform_indices = @transform_1, window_bounds = array<i64: 1, 4, 128>}, {transform_indices = @transform_2, window_bounds = array<i64: 1, 4, 128>}]} {
    %c0 = arith.constant 0 : index
    %c0_0 = arith.constant 0 : index
    %c0_1 = arith.constant 0 : index
    %0 = vector.load %arg3[%c0, %c0_0, %c0_1] : memref<1x4x128xf32, #tpu.memory_space<vmem>>, vector<1x4x128xf32>
    %c0_2 = arith.constant 0 : index
    %c0_3 = arith.constant 0 : index
    %c0_4 = arith.constant 0 : index
    %1 = vector.load %arg2[%c0_2, %c0_3, %c0_4] : memref<1x4x1xf32, #tpu.memory_space<vmem>>, vector<1x4x1xf32>
    %cst = arith.constant 5.000000e-01 : f32
    %2 = vector.broadcast %cst : f32 to vector<1x4x1xf32>
    %3 = arith.mulf %1, %2 : vector<1x4x1xf32>
    %cst_5 = arith.constant dense<0.000000e+00> : vector<1x128xf32>
    %4 = vector.multi_reduction <add>, %0, %cst_5 [1] : vector<1x4x128xf32> to vector<1x128xf32>
    %5 = vector.shape_cast %4 : vector<1x128xf32> to vector<1x1x128xf32>
    %6 = vector.broadcast %3 : vector<1x4x1xf32> to vector<1x4x128xf32>
    %7 = vector.broadcast %5 : vector<1x1x128xf32> to vector<1x4x128xf32>
    %8 = arith.mulf %6, %7 : vector<1x4x128xf32>
    %9 = math.tanh %8 : vector<1x4x128xf32>
    %cst_6 = arith.constant 5.000000e-01 : f32
    %10 = vector.broadcast %cst_6 : f32 to vector<1x4x128xf32>
    %11 = arith.mulf %9, %10 : vector<1x4x128xf32>
    %cst_7 = arith.constant 5.000000e-01 : f32
    %12 = vector.broadcast %cst_7 : f32 to vector<1x4x128xf32>
    %13 = arith.addf %11, %12 : vector<1x4x128xf32>
    %14 = arith.mulf %13, %0 : vector<1x4x128xf32>
    %c0_8 = arith.constant 0 : index
    %c0_9 = arith.constant 0 : index
    %c0_10 = arith.constant 0 : index
    %15 = vector.load %arg4[%c0_8, %c0_9, %c0_10] : memref<1x4x128xf32, #tpu.memory_space<vmem>>, vector<1x4x128xf32>
    tpu.vector_store %arg4[%c0_8, %c0_9, %c0_10], %14 {strides = array<i32>} : memref<1x4x128xf32, #tpu.memory_space<vmem>>, vector<1x4x128xf32>,
    return
  }
  func.func @transform_0(%arg0: i32, %arg1: i32) -> (i32, i32, i32) {
    %c0_i32 = arith.constant 0 : i32
    %c0_i32_0 = arith.constant 0 : i32
    %c0_i32_1 = arith.constant 0 : i32
    return %arg0, %c0_i32, %c0_i32_0 : i32, i32, i32
  }
  func.func @transform_1(%arg0: i32, %arg1: i32) -> (i32, i32, i32) {
    %c0_i32 = arith.constant 0 : i32
    %c0_i32_0 = arith.constant 0 : i32
    return %arg0, %c0_i32, %arg1 : i32, i32, i32
  }
  func.func @transform_2(%arg0: i32, %arg1: i32) -> (i32, i32, i32) {
    %c0_i32 = arith.constant 0 : i32
    %c0_i32_0 = arith.constant 0 : i32
    return %arg0, %c0_i32, %arg1 : i32, i32, i32
  }
}

</mosaic_0001>

<llo_original>
// kernel: tpu_custom_call.1
$region0: #{tpu_custom_call.1}
  #allocation0 [shape = 'u32[]', space=smem, size = 0x4, offset = 0x4, fixed_abs, tag = 'smem constant byte address 0x4 - core index']
  #allocation1 [shape = 'u32[144,128]{1,0:T(1,128)}', space=vmem, size = 0x12000, scoped, tag = 'internal scratch']
  %s0 = inlined_call_operand.vmem [shape: f32[2,4,1], index: 0, kind: input, shape index: {}]
  %s1 = inlined_call_operand.hbm [shape: f32[2,4,256], index: 1, kind: input, shape index: {}]
  %s2 = inlined_call_operand.hbm [shape: f32[2,4,256], index: 2, kind: output, shape index: {}]
  %s3 = sld [smem:[#allocation0]]
  $region45: #{tpu_custom_call.1} parent=0
    _
  %s5 = ssub.s32 1, %s3
  %s6 = scalar_select 0, %s5, %s3
  $region1: #{tpu_custom_call.1} parent=0
    #allocation2 [shape = 'u8[4096]{0}', space=vmem, size = 0x1000, scoped, tag = 'input window, operand 1']
    #allocation3 [shape = 's32[2]{0}', space=sflag, size = 0x8, scoped, tag = 'scoped memory for tpu_custom_call.1']
    #allocation4 [shape = 's32[2]{0}', space=sflag, size = 0x8, scoped, tag = 'scoped memory for tpu_custom_call.1']
    #allocation5 [shape = 'u8[4096]{0}', space=vmem, size = 0x1000, scoped, tag = 'output window, operand 0']
    %7 = vsyncpa [#allocation3], 0
    %s8 = scalar_lea.sflag [#allocation3], 1
    %9 = vsyncpa %s8, 0
    %10 = vsyncpa [#allocation4], 0
    %s11 = scalar_lea.sflag [#allocation4], 1
    %12 = vsyncpa %s11, 0
    loop: start=0, step=1, limit=6
    $region2: #{tpu_custom_call.1} parent=1 // loop_pre_header
      _
    $region3: #{tpu_custom_call.1} parent=1 // loop_header
      %s14 = sphi 0, %s18
      %p15 = scmp.ge.s32.totalorder %s14, 6
      %s21 = sphi 0, %s33
      %s22 = sphi 0, %s29
      %s23 = sphi 0, %s21
      %s24 = sphi 0, %s22
      %s25 = sphi 0, %s23
      %s26 = sphi 0, %s24
      %s36 = sphi 0, %s38
      %s39 = sphi 0, %s36
      %s40 = sphi 0, %s39
      %s56 = sphi 0, %s40
      %s64 = sphi 0, %s66
      %s67 = sphi 0, %s64
      %s68 = sphi 0, %s67
      %s84 = sphi 0, %s68
      %s92 = sphi 0, %s94
      %s95 = sphi 0, %s92
      %s96 = sphi 0, %s95
      %s112 = sphi 0, %s96
    $region4: #{tpu_custom_call.1} parent=1 // loop_header_branch
      %17 = sbr.rel (%p15) target = $region8
    $region5: #{tpu_custom_call.1} parent=1 // loop_body
      %s19 = ssub.s32 %s14, 1
      %s20 = ssub.s32 %s14, 2
      %s27 = sadd.s32 1, %s22
      %p28 = scmp.ge.s32.totalorder %s27, 2
      %s29 = scalar_select %p28, 0, %s27
      %s30 = sadd.s32 1, %s21
      %s31 = scalar_select %p28, %s30, %s21
      %p32 = scmp.ge.s32.totalorder %s31, 2
      %s33 = scalar_select %p32, 0, %s31
      %s34 = ssub.s32 %s21, %s33
      %p35 = scmp.eq.s32.totalorder %s34, 0
      %s37 = sadd.s32 %s36, 1
      %s38 = scalar_select %p35, %s36, %s37
      %p41 = pneg %p35
      %p42 = scmp.eq.s32.totalorder %s14, 3
      %p43 = por %p41, %p42
      %p44 = scmp.ne.s32.totalorder %s36, %s39
      %p45 = scmp.eq.s32.totalorder %s14, 0
      %p46 = por %p44, %p45
      %p47 = scmp.ne.s32.totalorder %s36, %s39
      %p48 = scmp.eq.s32.totalorder %s19, 3
      %p49 = por %p47, %p48
      %p50 = scmp.ne.s32.totalorder %s39, %s40
      %p51 = scmp.eq.s32.totalorder %s19, 0
      %p52 = por %p50, %p51
      %p53 = scmp.ne.s32.totalorder %s39, %s40
      %p54 = scmp.eq.s32.totalorder %s20, 3
      %p55 = por %p53, %p54
      %p57 = scmp.ne.s32.totalorder %s40, %s56
      %p58 = scmp.eq.s32.totalorder %s20, 0
      %p59 = por %p57, %p58
      %s60 = ssub.s32 %s21, %s33
      %s61 = ssub.s32 %s22, %s29
      %s62 = sor.u32 %s60, %s61
      %p63 = scmp.eq.s32.totalorder %s62, 0
      %s65 = sadd.s32 %s64, 1
      %s66 = scalar_select %p63, %s64, %s65
      %p69 = pneg %p63
      %p70 = scmp.eq.s32.totalorder %s14, 3
      %p71 = por %p69, %p70
      %p72 = scmp.ne.s32.totalorder %s64, %s67
      %p73 = scmp.eq.s32.totalorder %s14, 0
      %p74 = por %p72, %p73
      %p75 = scmp.ne.s32.totalorder %s64, %s67
      %p76 = scmp.eq.s32.totalorder %s19, 3
      %p77 = por %p75, %p76
      %p78 = scmp.ne.s32.totalorder %s67, %s68
      %p79 = scmp.eq.s32.totalorder %s19, 0
      %p80 = por %p78, %p79
      %p81 = scmp.ne.s32.totalorder %s67, %s68
      %p82 = scmp.eq.s32.totalorder %s20, 3
      %p83 = por %p81, %p82
      %p85 = scmp.ne.s32.totalorder %s68, %s84
      %p86 = scmp.eq.s32.totalorder %s20, 0
      %p87 = por %p85, %p86
      %s88 = ssub.s32 %s21, %s33
      %s89 = ssub.s32 %s22, %s29
      %s90 = sor.u32 %s88, %s89
      %p91 = scmp.eq.s32.totalorder %s90, 0
      %s93 = sadd.s32 %s92, 1
      %s94 = scalar_select %p91, %s92, %s93
      %p97 = pneg %p91
      %p98 = scmp.eq.s32.totalorder %s14, 3
      %p99 = por %p97, %p98
      %p100 = scmp.ne.s32.totalorder %s92, %s95
      %p101 = scmp.eq.s32.totalorder %s14, 0
      %p102 = por %p100, %p101
      %p103 = scmp.ne.s32.totalorder %s92, %s95
      %p104 = scmp.eq.s32.totalorder %s19, 3
      %p105 = por %p103, %p104
      %p106 = scmp.ne.s32.totalorder %s95, %s96
      %p107 = scmp.eq.s32.totalorder %s19, 0
      %p108 = por %p106, %p107
      %p109 = scmp.ne.s32.totalorder %s95, %s96
      %p110 = scmp.eq.s32.totalorder %s20, 3
      %p111 = por %p109, %p110
      %p113 = scmp.ne.s32.totalorder %s96, %s112
      %p114 = scmp.eq.s32.totalorder %s20, 0
      %p115 = por %p113, %p114
      %p116 = scmp.le.s32.totalorder 1, %s14
      %p117 = scmp.lt.s32.totalorder %s14, 5
      %p118 = pnand %p116, %p117
      %p119 = pneg %p118
      // Predicated region
      $region9: #{tpu_custom_call.1} parent=5 // pred_check
        _
      $region10: #{tpu_custom_call.1} parent=5 // pred_check_branch
        %121 = sbr.rel (%p118) target = $region12
      $region11: #{tpu_custom_call.1} parent=5 // pred_region
        %s122 = ssub.s32 %s14, 1
      $region12: #{tpu_custom_call.1} parent=5 // pred_fallthru
        _
      %p123 = scmp.lt.s32.totalorder %s14, 4
      // Predicated region
      $region13: #{tpu_custom_call.1} parent=5 // pred_check
        %p124 = pneg %p123
      $region14: #{tpu_custom_call.1} parent=5 // pred_check_branch
        %126 = sbr.rel (%p124) target = $region16
      $region15: #{tpu_custom_call.1} parent=5 // pred_region
        // Predicated region
        $region17: #{tpu_custom_call.1} parent=15 // pred_check
          %p127 = pneg %p46
        $region18: #{tpu_custom_call.1} parent=15 // pred_check_branch
          %129 = sbr.rel (%p127) target = $region20
        $region19: #{tpu_custom_call.1} parent=15 // pred_region
          %p130 = scmp.lt.s32.totalorder %s21, 1
          %s131 = scalar_select %p130, %s21, 1
          %s132 = smul.addr %s131, 4
          %s133 = scalar_lea.vmem %s0, %s132
        $region20: #{tpu_custom_call.1} parent=15 // pred_fallthru
          _
        // Predicated region
        $region21: #{tpu_custom_call.1} parent=15 // pred_check
          %p134 = pneg %p74
        $region22: #{tpu_custom_call.1} parent=15 // pred_check_branch
          %136 = sbr.rel (%p134) target = $region24
        $region23: #{tpu_custom_call.1} parent=15 // pred_region
          %s137 = sand.u32 %s64, 1
          %s138 = scalar_lea.sflag [#allocation3], %s137
          %s139 = sand.u32 %s64, 1
          %s140 = smul.addr %s139, 4
          %s141 = scalar_lea.vmem [#allocation2], %s140
          %s143 = ssub.s32 64, 64
          %144 = vsyncadd %s138, %s143
          %s145 = smul.addr %s21, 2
          %s146 = sadd.s32 %s22, %s145
          %s147 = smul.addr %s146, 64
          %s148 = scalar_lea.hbm %s1, %s147
          %s150 = sshll.u32 %s141, 4
          %s151 = int_to_ptr.vmem [resolvable:$true] %s150
          %153 = dma.hbm_to_vmem [thread:$0]  %s148, 64, %s151, %s138
        $region24: #{tpu_custom_call.1} parent=15 // pred_fallthru
          _
      $region16: #{tpu_custom_call.1} parent=5 // pred_fallthru
        _
      %p154 = scmp.le.s32.totalorder 1, %s14
      %p155 = scmp.lt.s32.totalorder %s14, 5
      %p156 = pnand %p154, %p155
      %p157 = pneg %p156
      // Predicated region
      $region25: #{tpu_custom_call.1} parent=5 // pred_check
        _
      $region26: #{tpu_custom_call.1} parent=5 // pred_check_branch
        %159 = sbr.rel (%p156) target = $region28
      $region27: #{tpu_custom_call.1} parent=5 // pred_region
        %s160 = ssub.s32 %s14, 1
        %s161 = sand.u32 %s67, 1
        %s162 = scalar_lea.sflag [#allocation3], %s161
        %s163 = sand.u32 %s67, 1
        %s164 = smul.addr %s163, 4
        %s165 = scalar_lea.vmem [#allocation2], %s164
        // Predicated region
        $region29: #{tpu_custom_call.1} parent=27 // pred_check
          %p166 = pneg %p80
        $region30: #{tpu_custom_call.1} parent=27 // pred_check_branch
          %168 = sbr.rel (%p166) target = $region32
        $region31: #{tpu_custom_call.1} parent=27 // pred_region
          %169 = dma.done %s162, 64
        $region32: #{tpu_custom_call.1} parent=27 // pred_fallthru
          _
        %p170 = scmp.lt.s32.totalorder %s23, 1
        %s171 = scalar_select %p170, %s23, 1
        %s172 = smul.addr %s171, 4
        %s173 = scalar_lea.vmem %s0, %s172
        %p174 = pneg %p52
        %p175 = pneg %p49
        %s176 = sand.u32 %s67, 1
        %s177 = scalar_lea.sflag [#allocation3], %s176
        %s178 = sand.u32 %s67, 1
        %s179 = smul.addr %s178, 4
        %s180 = scalar_lea.vmem [#allocation2], %s179
        %p181 = pneg %p80
        %p182 = pneg %p77
        %p183 = pneg %p108
        %p184 = pneg %p105
        %s185 = sand.u32 %s95, 1
        %s186 = scalar_lea.sflag [#allocation4], %s185
        %s187 = sand.u32 %s95, 1
        %s188 = smul.addr %s187, 4
        %s189 = scalar_lea.vmem [#allocation5], %s188
        %p190 = scmp.lt.s32.totalorder %s23, 1
        %s191 = scalar_select %p190, %s23, 1
        %s192 = smul.addr %s191, 4
        %s193 = scalar_lea.vmem %s0, %s192
        %v194 = vld [vmem:[%s165] sm:$0xf]
        %v195 = vld [vmem:[%s193] sm:$0xf]
        %v196 = vmul.f32 %v195, 0.5
        %vm197 = vcmask 1043456
        %v198 = vsel %vm197, %v194, 0.0
        %v199 = vrot.slane %v198, 4
        %v200 = vadd.f32 %v198, %v199
        %v201 = vrot.slane %v200, 2
        %v202 = vadd.f32 %v200, %v201
        %v203 = vrot.slane %v202, 1
        %v204 = vadd.f32 %v202, %v203
        %206 = vset.pattern.permute.xlu0 0
        %207 = vperm.xlu0 %206, %v196
        %v208 = vpop.permute.xlu0 %207
        %v210 = vmul.f32 %v208, %v204
        %v211 = vtanh.pop %v210
        %v212 = vmul.f32 %v211, 0.5
        %v213 = vadd.f32 %v212, 0.5
        %v214 = vmul.f32 %v213, %v194
        %215 = vst [vmem:[%s189] sm:$0xf] %v214
        %s216 = sand.u32 %s95, 1
        %s217 = scalar_lea.sflag [#allocation4], %s216
        %s218 = sand.u32 %s95, 1
        %s219 = smul.addr %s218, 4
        %s220 = scalar_lea.vmem [#allocation5], %s219
        // Predicated region
        $region33: #{tpu_custom_call.1} parent=27 // pred_check
          %p221 = pneg %p105
        $region34: #{tpu_custom_call.1} parent=27 // pred_check_branch
          %223 = sbr.rel (%p221) target = $region36
        $region35: #{tpu_custom_call.1} parent=27 // pred_region
          %s225 = ssub.s32 64, 64
          %226 = vsyncadd %s217, %s225
          %s227 = smul.addr %s23, 2
          %s228 = sadd.s32 %s24, %s227
          %s229 = smul.addr %s228, 64
          %s230 = scalar_lea.hbm %s2, %s229
          %s232 = sshll.u32 %s220, 4
          %s233 = int_to_ptr.vmem [resolvable:$true] %s232
          %235 = dma.vmem_to_hbm [thread:$0]  %s233, 64, %s230, %s217
        $region36: #{tpu_custom_call.1} parent=27 // pred_fallthru
          _
      $region28: #{tpu_custom_call.1} parent=5 // pred_fallthru
        _
      %p236 = scmp.le.s32.totalorder 2, %s14
      // Predicated region
      $region37: #{tpu_custom_call.1} parent=5 // pred_check
        %p237 = pneg %p236
      $region38: #{tpu_custom_call.1} parent=5 // pred_check_branch
        %239 = sbr.rel (%p237) target = $region40
      $region39: #{tpu_custom_call.1} parent=5 // pred_region
        %s240 = ssub.s32 %s14, 2
        // Predicated region
        $region41: #{tpu_custom_call.1} parent=39 // pred_check
          %p241 = pneg %p111
        $region42: #{tpu_custom_call.1} parent=39 // pred_check_branch
          %243 = sbr.rel (%p241) target = $region44
        $region43: #{tpu_custom_call.1} parent=39 // pred_region
          %s244 = sand.u32 %s96, 1
          %s245 = scalar_lea.sflag [#allocation4], %s244
          %s246 = sand.u32 %s96, 1
          %s247 = smul.addr %s246, 4
          %s248 = scalar_lea.vmem [#allocation5], %s247
          %249 = dma.done %s245, 64
        $region44: #{tpu_custom_call.1} parent=39 // pred_fallthru
          _
      $region40: #{tpu_custom_call.1} parent=5 // pred_fallthru
        _
    $region6: #{tpu_custom_call.1} parent=1 // loop_footer
      %s18 = sadd.s32 1, %s14
    $region7: #{tpu_custom_call.1} parent=1 // loop_footer_branch
      %13 = sbr.rel target = $region3
    $region8: #{tpu_custom_call.1} parent=1 // loop_exit
      _
    %250 = vsyncpa [#allocation3], 1
    %s251 = scalar_lea.sflag [#allocation3], 1
    %252 = vsyncpa %s251, 1
    %253 = vsyncpa [#allocation4], 1
    %s254 = scalar_lea.sflag [#allocation4], 1
    %255 = vsyncpa %s254, 1

</llo_original>
